<compile_context>
chip_gen: v7x
topology: tpu7x:2x2x1
jax: 0.10.0
libtpu: 0.0.40
codegen_flags: <defaults>
</compile_context>

<pallas_src>
import functools
import math
from typing import NamedTuple, Optional, Tuple

import jax
import jax.numpy as jnp
from jax.experimental import pallas as pl
from jax.experimental.pallas import tpu as pltpu

LANE = 128      # vreg lane width  -> lane-dense output stores
SUBLANE = 8     # f32 sublane width


def _round_up(x: int, m: int) -> int:
    return ((x + m - 1) // m) * m


# ----------------------------- hardware-aware tiling ------------------------


def _vmem_capacity_bytes() -> int:
    """Per-core VMEM capacity; conservative 64 MiB fallback if the query fails."""
    try:
        cap = int(getattr(pltpu.get_tpu_info(), "vmem_capacity_bytes", 0))
        if cap > 0:
            return cap
    except Exception:
        pass
    return 64 << 20


def _vmem_policy() -> Tuple[int, int, bool]:
    """(tile budget, vmem_limit cap, force >=2 batch tiles) per TPU generation."""
    cap = _vmem_capacity_bytes()
    if cap >= (100 << 20):
        # v5e / v6e: 128 MiB VMEM, single TensorCore -> use big tiles, no split.
        return 96 << 20, 100 << 20, False
    # v7x-like: 64 MiB VMEM, 2 TensorCores -> keep 2 batch tiles for megacore.
    return 40 << 20, 48 << 20, True


class _Tiling(NamedTuple):
    tb: int
    tn: int
    vmem_limit: int


def _choose_tiles(B: int, out_p: int, in_f: int, itemsize: int, *, tt: int = 1) -> _Tiling:
    """Pick (batch tile, out-feature tile, vmem limit).

    Prefers a single lane-dense column tile (W^T resident for the whole time
    loop, xs streamed exactly once); shrinks the batch tile first and only
    then the column tile."""
    budget, limit_cap, two_batch_tiles = _vmem_policy()

    if B <= SUBLANE or B % SUBLANE != 0:
        tb = tb_min = B                               # full-dim tile (always legal)
    else:
        tb = _round_up(pl.cdiv(B, 2), SUBLANE) if two_batch_tiles else B
        tb_min = SUBLANE
    tn = out_p                                        # prefer one column tile

    def est(tb_, tn_):
        state = tb_ * tn_ * 4
        x_blk = tt * tb_ * in_f * itemsize
        w_blk = in_f * tn_ * itemsize
        spk_blk = tt * tb_ * tn_ * 2                  # bf16 spike output block
        # 2x double-buffering on streamed blocks + state ins/outs + scratch.
        return 2 * (x_blk + w_blk + tn_ * 4 + spk_blk) + 10 * state

    while est(tb, tn) > budget and (tb > tb_min or tn > LANE):
        if tb > tb_min:
            tb = max(tb_min, _round_up(tb // 2, SUBLANE))
        else:
            tn = max(LANE, _round_up(tn // 2, LANE))

    vmem_limit = int(min(max(est(tb, tn) + (8 << 20), 32 << 20), limit_cap))
    return _Tiling(tb, tn, vmem_limit)


def _choose_tt(T: int) -> int:
    """Timesteps per grid step (amortizes per-grid-step pipeline overhead)."""
    for cand in (8, 4, 2, 1):
        if T % cand == 0:
            return cand
    return 1


# ----------------------------- layer preparation ----------------------------


class SpikingLinearParams(NamedTuple):
    """Layer weights prepared once (transposed + lane-padded)."""
    w_t: jax.Array          # [in_features, out_padded]  (compute dtype)
    bias: jax.Array         # [1, out_padded]            (float32)
    out_features: int       # logical (unpadded) output width


def prepare_spiking_linear(weight, bias, compute_dtype=jnp.bfloat16) -> SpikingLinearParams:
    """One-time prep (hoisted out of the per-timestep path): transpose W to
    [in, out], pad the out (lane) dim to a multiple of 128, reshape bias.

    compute_dtype=bfloat16 (default) halves W/x DMA bytes and uses the native
    bf16 MXU path; the matmul still accumulates in float32 and all LIF state
    math stays float32. Pass jnp.float32 for a reference-exact f32 path."""
    out_f, in_f = weight.shape
    out_p = _round_up(max(out_f, LANE), LANE)
    w_t = jnp.asarray(weight, jnp.float32).T                       # [in_f, out_f]
    w_t = jnp.pad(w_t, ((0, 0), (0, out_p - out_f))).astype(compute_dtype)
    b = jnp.pad(jnp.asarray(bias, jnp.float32), (0, out_p - out_f))
    return SpikingLinearParams(w_t=w_t, bias=b.reshape(1, out_p), out_features=out_f)


def _prep_state(state, B, out_p):
    """Accepts None, lane-padded [B, out_p] (fast path, no HBM pad copy) or
    unpadded [B, out_f] state."""
    if state is None:
        return jnp.zeros((B, out_p), jnp.float32), jnp.zeros((B, out_p), jnp.float32)
    v, i = state
    pad = out_p - v.shape[-1]
    if pad == 0:
        return v.astype(jnp.float32), i.astype(jnp.float32)
    return (jnp.pad(v.astype(jnp.float32), ((0, 0), (0, pad))),
            jnp.pad(i.astype(jnp.float32), ((0, 0), (0, pad))))


def _lif_update(y, v_prev, i_prev, *, alpha, beta, v_th, v_reset):
    i_syn = alpha * i_prev + y
    v_mem = beta * v_prev + i_syn
    spike = v_mem >= v_th
    v_mem = jnp.where(spike, v_reset, v_mem)
    return spike, v_mem, i_syn


# ----------------------------- single-timestep kernel -----------------------


def _step_kernel(x_ref, w_ref, b_ref, v_in_ref, i_in_ref,
                 spk_ref, v_out_ref, i_out_ref,
                 *, alpha, beta, v_th, v_reset):
    y = jnp.dot(x_ref[...], w_ref[...], preferred_element_type=jnp.float32)
    y = y + b_ref[...]
    spike, v_mem, i_syn = _lif_update(y, v_in_ref[...], i_in_ref[...],
                                      alpha=alpha, beta=beta,
                                      v_th=v_th, v_reset=v_reset)
    spk_ref[...] = spike.astype(jnp.float32).astype(spk_ref.dtype)
    v_out_ref[...] = v_mem
    i_out_ref[...] = i_syn


def spiking_linear_step(x, params: SpikingLinearParams, state=None, *,
                        alpha, beta, v_threshold=1.0, v_reset=0.0,
                        spike_dtype=jnp.bfloat16, padded_outputs=False):
    """One SpikingLinear.forward step. Returns (spikes, (v_mem, i_syn)).

    Spikes are emitted as `spike_dtype` (bf16 by default; values are exactly
    0/1). With padded_outputs=True everything keeps the lane-padded width
    out_p (fast path for chained timesteps: no pad/slice HBM round trips;
    pad columns see zero input and never spike for v_threshold > 0)."""
    # TODO(synk): alpha/beta are compile-time constants; if they must stay
    # traced (learnable under grad), route them through SMEM instead.
    B, in_f = x.shape
    out_p = params.w_t.shape[1]
    out_f = params.out_features
    x = x.astype(params.w_t.dtype)
    v_prev, i_prev = _prep_state(state, B, out_p)

    tiling = _choose_tiles(B, out_p, in_f, params.w_t.dtype.itemsize, tt=1)
    tb, tn = tiling.tb, tiling.tn
    gb, gn = pl.cdiv(B, tb), pl.cdiv(out_p, tn)

    # Put the axis that indexes the larger streamed operand outermost so its
    # block index is constant across consecutive steps (DMA skipped).
    w_bytes = params.w_t.size * params.w_t.dtype.itemsize
    x_bytes = x.size * x.dtype.itemsize
    n_outer = gn > 1 and (gb - 1) * w_bytes > (gn - 1) * x_bytes

    if n_outer:                                   # grid = (j, i): W tile resident
        grid = (gn, gb)
        x_spec = pl.BlockSpec((tb, in_f), lambda j, i: (i, 0))
        w_spec = pl.BlockSpec((in_f, tn), lambda j, i: (0, j))
        b_spec = pl.BlockSpec((1, tn), lambda j, i: (0, j))
        st_spec = pl.BlockSpec((tb, tn), lambda j, i: (i, j))
    else:                                         # grid = (i, j): x tile resident
        grid = (gb, gn)
        x_spec = pl.BlockSpec((tb, in_f), lambda i, j: (i, 0))
        w_spec = pl.BlockSpec((in_f, tn), lambda i, j: (0, j))
        b_spec = pl.BlockSpec((1, tn), lambda i, j: (0, j))
        st_spec = pl.BlockSpec((tb, tn), lambda i, j: (i, j))

    kernel = functools.partial(_step_kernel, alpha=float(alpha), beta=float(beta),
                               v_th=float(v_threshold), v_reset=float(v_reset))
    state_sds = jax.ShapeDtypeStruct((B, out_p), jnp.float32)

    spikes, v_new, i_new = pl.pallas_call(
        kernel,
        out_shape=(jax.ShapeDtypeStruct((B, out_p), spike_dtype), state_sds, state_sds),
        grid=grid,
        in_specs=[x_spec, w_spec, b_spec, st_spec, st_spec],
        out_specs=(st_spec, st_spec, st_spec),
        input_output_aliases={3: 1, 4: 2},                    # in-place state
        compiler_params=pltpu.CompilerParams(
            dimension_semantics=("parallel", "parallel"),
            vmem_limit_bytes=tiling.vmem_limit),
    )(x, params.w_t, params.bias, v_prev, i_prev)

    if padded_outputs:
        return spikes, (v_new, i_new)
    return spikes[:, :out_f], (v_new[:, :out_f], i_new[:, :out_f])


# ----------------------------- fused time-loop kernel -----------------------


def _seq_kernel(x_ref, w_ref, b_ref, v0_ref, i0_ref,
                spk_ref, vT_ref, iT_ref,
                v_sc, i_sc,
                *, alpha, beta, v_th, v_reset, tt):
    tblk = pl.program_id(2)

    @pl.when(tblk == 0)
    def _():
        v_sc[...] = v0_ref[...]
        i_sc[...] = i0_ref[...]

    # One MXU pass for all `tt` timesteps of this chunk: [(tt*tb), in_f] @ [in_f, tn].
    xb = x_ref[...]                                   # (tt, tb, in_f)
    tb = xb.shape[1]
    y = jnp.dot(xb.reshape(tt * tb, xb.shape[2]), w_ref[...],
                preferred_element_type=jnp.float32) + b_ref[...]

    v = v_sc[...]
    i = i_sc[...]
    for k in range(tt):                               # static unroll, tt <= 8
        spike, v, i = _lif_update(y[k * tb:(k + 1) * tb], v, i,
                                  alpha=alpha, beta=beta,
                                  v_th=v_th, v_reset=v_reset)
        spk_ref[k] = spike.astype(jnp.float32).astype(spk_ref.dtype)
    v_sc[...] = v
    i_sc[...] = i

    @pl.when(tblk == pl.num_programs(2) - 1)
    def _():
        vT_ref[...] = v
        iT_ref[...] = i


def spiking_linear_sequence(xs, params: SpikingLinearParams, state=None, *,
                            alpha, beta, v_threshold=1.0, v_reset=0.0,
                            spike_dtype=jnp.bfloat16, padded_outputs=False):
    """Fused time loop: xs is [T, B, in_features]. The whole sequence runs in
    a single pallas_call; v_mem/i_syn stay resident in VMEM scratch, W^T is
    fetched once per column tile, spikes are written back as bf16, and the
    time axis is chunked (TT steps per grid iteration).
    Returns (spikes [T, B, out], (v_mem, i_syn))."""
    T, B, in_f = xs.shape
    out_p = params.w_t.shape[1]
    out_f = params.out_features
    xs = xs.astype(params.w_t.dtype)
    v0, i0 = _prep_state(state, B, out_p)

    tt = _choose_tt(T)
    tiling = _choose_tiles(B, out_p, in_f, params.w_t.dtype.itemsize, tt=tt)
    tb, tn = tiling.tb, tiling.tn
    gb, gn = pl.cdiv(B, tb), pl.cdiv(out_p, tn)
    n_tblk = T // tt

    # Grid order (j, i, t): the W^T column tile (indexed by j only) is DMA'd
    # exactly once per j; xs streams once per j; time innermost carries state.
    grid = (gn, gb, n_tblk)
    x_spec = pl.BlockSpec((tt, tb, in_f), lambda j, i, t: (t, i, 0))
    w_spec = pl.BlockSpec((in_f, tn), lambda j, i, t: (0, j))
    b_spec = pl.BlockSpec((1, tn), lambda j, i, t: (0, j))
    st_spec = pl.BlockSpec((tb, tn), lambda j, i, t: (i, j))
    spk_spec = pl.BlockSpec((tt, tb, tn), lambda j, i, t: (t, i, j))

    kernel = functools.partial(_seq_kernel, alpha=float(alpha), beta=float(beta),
                               v_th=float(v_threshold), v_reset=float(v_reset), tt=tt)
    state_sds = jax.ShapeDtypeStruct((B, out_p), jnp.float32)

    spikes, v_new, i_new = pl.pallas_call(
        kernel,
        out_shape=(jax.ShapeDtypeStruct((T, B, out_p), spike_dtype),
                   state_sds, state_sds),
        grid=grid,
        in_specs=[x_spec, w_spec, b_spec, st_spec, st_spec],
        out_specs=(spk_spec, st_spec, st_spec),
        scratch_shapes=[pltpu.VMEM((tb, tn), jnp.float32),
                        pltpu.VMEM((tb, tn), jnp.float32)],
        input_output_aliases={3: 1, 4: 2},
        compiler_params=pltpu.CompilerParams(
            dimension_semantics=("parallel", "parallel", "arbitrary"),
            vmem_limit_bytes=tiling.vmem_limit),
    )(xs, params.w_t, params.bias, v0, i0)

    if padded_outputs:
        return spikes, (v_new, i_new)
    return spikes[:, :, :out_f], (v_new[:, :out_f], i_new[:, :out_f])


# ----------------------------- pure-JAX reference ---------------------------


def _reference_step(x, weight, bias, alpha, beta, v_th, v_reset, state):
    """Mirrors LIFNeuron.forward / SpikingLinear.forward in float32."""
    y = x @ weight.T + bias
    if state is None:
        v_mem = jnp.zeros_like(y)
        i_syn = jnp.zeros_like(y)
    else:
        v_mem, i_syn = state
    i_syn = alpha * i_syn + y
    v_mem = beta * v_mem + i_syn
    spikes = (v_mem >= v_th).astype(jnp.float32)
    v_mem = v_mem * (1 - spikes) + v_reset * spikes
    return spikes, (v_mem, i_syn)


# ----------------------------------- demo -----------------------------------


if __name__ == "__main__":
    # Module hyperparameters (LIFNeuron defaults).
    in_features, out_features = 32, 64
    tau_mem, tau_syn = 20.0, 5.0
    v_threshold, v_reset = 1.0, 0.0
    beta = math.exp(-1.0 / tau_mem)
    alpha = math.exp(-1.0 / tau_syn)
    lif_kw = dict(alpha=alpha, beta=beta, v_threshold=v_threshold, v_reset=v_reset)

    batch, T = 32, 8
    key = jax.random.PRNGKey(0)
    k_w, k_b, k_x1, k_x2, k_seq = jax.random.split(key, 5)
    bound = 1.0 / math.sqrt(in_features)                 # nn.Linear init range
    weight = jax.random.uniform(k_w, (out_features, in_features),
                                jnp.float32, -bound, bound)
    bias = jax.random.uniform(k_b, (out_features,), jnp.float32, -bound, bound)
    x1 = jax.random.normal(k_x1, (batch, in_features), jnp.float32) * 1.5
    x2 = jax.random.normal(k_x2, (batch, in_features), jnp.float32) * 1.5
    xs = jax.random.normal(k_seq, (T, batch, in_features), jnp.float32) * 1.5

    # Snap test data onto a coarse binary grid so the linear layer is exact in
    # every MXU precision mode (bf16 single-pass, bf16x3, f32): the kernels
    # (including the default bf16 streaming path) are then bit-comparable to
    # the float32 reference and the spike threshold has no fp ties.
    weight = jnp.round(weight * 256.0) / 256.0
    x1 = jnp.clip(jnp.round(x1 * 32.0) / 32.0, -4.0, 4.0)
    x2 = jnp.clip(jnp.round(x2 * 32.0) / 32.0, -4.0, 4.0)
    xs = jnp.clip(jnp.round(xs * 32.0) / 32.0, -4.0, 4.0)

    # Reference trajectory (float32, exact given the snapped inputs).
    ref_s1, ref_st1 = _reference_step(x1, weight, bias, alpha, beta,
                                      v_threshold, v_reset, None)
    ref_s2, ref_st2 = _reference_step(x2, weight, bias, alpha, beta,
                                      v_threshold, v_reset, ref_st1)
    ref_state, ref_spk_list = None, []
    for t in range(T):
        s_t, ref_state = _reference_step(xs[t], weight, bias, alpha, beta,
                                         v_threshold, v_reset, ref_state)
        ref_spk_list.append(s_t)
    ref_spk = jnp.stack(ref_spk_list)

    out_f = out_features
    for name, cdt in (("f32", jnp.float32), ("bf16", jnp.bfloat16)):
        params = prepare_spiking_linear(weight, bias, compute_dtype=cdt)

        # Two chained single steps using the lane-padded fast-path state.
        spk1, st1 = spiking_linear_step(x1, params, state=None,
                                        padded_outputs=True, **lif_kw)
        spk2, st2 = spiking_linear_step(x2, params, state=st1,
                                        padded_outputs=True, **lif_kw)
        # Fused time loop (state resident in VMEM across all T steps).
        spk_seq, (vT, iT) = spiking_linear_sequence(xs, params, state=None,
                                                    padded_outputs=True, **lif_kw)
        jax.block_until_ready((spk1, spk2, st2, spk_seq, vT, iT))

        assert jnp.array_equal(spk1[:, :out_f].astype(jnp.float32), ref_s1), \
            f"spikes mismatch (step 1, {name})"
        assert jnp.array_equal(spk2[:, :out_f].astype(jnp.float32), ref_s2), \
            f"spikes mismatch (step 2, {name})"
        assert jnp.allclose(st2[0][:, :out_f], ref_st2[0], atol=1e-5), \
            f"v_mem mismatch (step 2, {name})"
        assert jnp.allclose(st2[1][:, :out_f], ref_st2[1], atol=1e-5), \
            f"i_syn mismatch (step 2, {name})"
        assert jnp.array_equal(spk_seq[:, :, :out_f].astype(jnp.float32), ref_spk), \
            f"spikes mismatch (sequence, {name})"
        assert jnp.allclose(vT[:, :out_f], ref_state[0], atol=1e-5), \
            f"v_mem mismatch (sequence, {name})"
        assert jnp.allclose(iT[:, :out_f], ref_state[1], atol=1e-5), \
            f"i_syn mismatch (sequence, {name})"

    print("KERNEL_OK")
</pallas_src>

<mosaic_0001>
module attributes {stable_mosaic.version = 11 : i64} {
  func.func @_step_kernel(%arg0: i32, %arg1: i32, %arg2: memref<16x32xf32, #tpu.memory_space<vmem>>, %arg3: memref<32x128xf32, #tpu.memory_space<vmem>>, %arg4: memref<1x128xf32, #tpu.memory_space<vmem>>, %arg5: memref<16x128xf32, #tpu.memory_space<vmem>>, %arg6: memref<16x128xf32, #tpu.memory_space<vmem>>, %arg7: memref<16x128xbf16, #tpu.memory_space<vmem>>, %arg8: memref<16x128xf32, #tpu.memory_space<vmem>>, %arg9: memref<16x128xf32, #tpu.memory_space<vmem>>) attributes {dimension_semantics = [#tpu.dimension_semantics<parallel>, #tpu.dimension_semantics<parallel>], iteration_bounds = array<i64: 2, 1>, scalar_prefetch = 0 : i64, scratch_operands = 0 : i64, tpu.core_type = #tpu.core_type<tc>, window_params = [{transform_indices = @transform_0, window_bounds = array<i64: 16, 32>}, {transform_indices = @transform_1, window_bounds = array<i64: 32, 128>}, {transform_indices = @transform_2, window_bounds = array<i64: 1, 128>}, {transform_indices = @transform_3, window_bounds = array<i64: 16, 128>}, {transform_indices = @transform_4, window_bounds = array<i64: 16, 128>}, {transform_indices = @transform_5, window_bounds = array<i64: 16, 128>}, {transform_indices = @transform_6, window_bounds = array<i64: 16, 128>}, {transform_indices = @transform_7, window_bounds = array<i64: 16, 128>}]} {
    %c0 = arith.constant 0 : index
    %c0_0 = arith.constant 0 : index
    %0 = vector.load %arg2[%c0, %c0_0] : memref<16x32xf32, #tpu.memory_space<vmem>>, vector<16x32xf32>
    %c0_1 = arith.constant 0 : index
    %c0_2 = arith.constant 0 : index
    %1 = vector.load %arg3[%c0_1, %c0_2] : memref<32x128xf32, #tpu.memory_space<vmem>>, vector<32x128xf32>
    %cst = arith.constant dense<0.000000e+00> : vector<16x128xf32>
    %2 = tpu.matmul %0, %1, %cst {dimension_numbers = #tpu.dot_dimension_numbers<[1], [0], [0], [1], [0, 0, 1, 1], [], []>} : vector<16x32xf32>, vector<32x128xf32>, vector<16x128xf32> -> vector<16x128xf32>
    %c0_3 = arith.constant 0 : index
    %c0_4 = arith.constant 0 : index
    %3 = vector.load %arg4[%c0_3, %c0_4] : memref<1x128xf32, #tpu.memory_space<vmem>>, vector<1x128xf32>
    %4 = vector.broadcast %3 : vector<1x128xf32> to vector<16x128xf32>
    %5 = arith.addf %2, %4 : vector<16x128xf32>
    %c0_5 = arith.constant 0 : index
    %c0_6 = arith.constant 0 : index
    %6 = vector.load %arg5[%c0_5, %c0_6] : memref<16x128xf32, #tpu.memory_space<vmem>>, vector<16x128xf32>
    %c0_7 = arith.constant 0 : index
    %c0_8 = arith.constant 0 : index
    %7 = vector.load %arg6[%c0_7, %c0_8] : memref<16x128xf32, #tpu.memory_space<vmem>>, vector<16x128xf32>
    %cst_9 = arith.constant 0.818730771 : f32
    %8 = vector.broadcast %cst_9 : f32 to vector<16x128xf32>
    %9 = arith.mulf %8, %7 : vector<16x128xf32>
    %10 = arith.addf %9, %5 : vector<16x128xf32>
    %cst_10 = arith.constant 0.951229453 : f32
    %11 = vector.broadcast %cst_10 : f32 to vector<16x128xf32>
    %12 = arith.mulf %11, %6 : vector<16x128xf32>
    %13 = arith.addf %12, %10 : vector<16x128xf32>
    %cst_11 = arith.constant 1.000000e+00 : f32
    %14 = vector.broadcast %cst_11 : f32 to vector<16x128xf32>
    %15 = arith.cmpf oge, %13, %14 : vector<16x128xf32>
    %cst_12 = arith.constant 0.000000e+00 : f32
    %16 = vector.broadcast %cst_12 : f32 to vector<16x128xf32>
    %17 = arith.select %15, %16, %13 : vector<16x128xi1>, vector<16x128xf32>
    %18 = arith.extui %15 : vector<16x128xi1> to vector<16x128xi32>
    %19 = arith.sitofp %18 : vector<16x128xi32> to vector<16x128xf32>
    %20 = arith.truncf %19 : vector<16x128xf32> to vector<16x128xbf16>
    %c0_13 = arith.constant 0 : index
    %c0_14 = arith.constant 0 : index
    %21 = vector.load %arg7[%c0_13, %c0_14] : memref<16x128xbf16, #tpu.memory_space<vmem>>, vector<16x128xbf16>
    tpu.vector_store %arg7[%c0_13, %c0_14], %20 {strides = array<i32>} : memref<16x128xbf16, #tpu.memory_space<vmem>>, vector<16x128xbf16>,
    %c0_15 = arith.constant 0 : index
    %c0_16 = arith.constant 0 : index
    %22 = vector.load %arg8[%c0_15, %c0_16] : memref<16x128xf32, #tpu.memory_space<vmem>>, vector<16x128xf32>
    tpu.vector_store %arg8[%c0_15, %c0_16], %17 {strides = array<i32>} : memref<16x128xf32, #tpu.memory_space<vmem>>, vector<16x128xf32>,
    %c0_17 = arith.constant 0 : index
    %c0_18 = arith.constant 0 : index
    %23 = vector.load %arg9[%c0_17, %c0_18] : memref<16x128xf32, #tpu.memory_space<vmem>>, vector<16x128xf32>
    tpu.vector_store %arg9[%c0_17, %c0_18], %10 {strides = array<i32>} : memref<16x128xf32, #tpu.memory_space<vmem>>, vector<16x128xf32>,
    return
  }
  func.func @transform_0(%arg0: i32, %arg1: i32) -> (i32, i32) {
    %c0_i32 = arith.constant 0 : i32
    %c0_i32_0 = arith.constant 0 : i32
    return %arg0, %c0_i32 : i32, i32
  }
  func.func @transform_1(%arg0: i32, %arg1: i32) -> (i32, i32) {
    %c0_i32 = arith.constant 0 : i32
    %c0_i32_0 = arith.constant 0 : i32
    return %c0_i32, %arg1 : i32, i32
  }
  func.func @transform_2(%arg0: i32, %arg1: i32) -> (i32, i32) {
    %c0_i32 = arith.constant 0 : i32
    %c0_i32_0 = arith.constant 0 : i32
    return %c0_i32, %arg1 : i32, i32
  }
  func.func @transform_3(%arg0: i32, %arg1: i32) -> (i32, i32) {
    %c0_i32 = arith.constant 0 : i32
    return %arg0, %arg1 : i32, i32
  }
  func.func @transform_4(%arg0: i32, %arg1: i32) -> (i32, i32) {
    %c0_i32 = arith.constant 0 : i32
    return %arg0, %arg1 : i32, i32
  }
  func.func @transform_5(%arg0: i32, %arg1: i32) -> (i32, i32) {
    %c0_i32 = arith.constant 0 : i32
    return %arg0, %arg1 : i32, i32
  }
  func.func @transform_6(%arg0: i32, %arg1: i32) -> (i32, i32) {
    %c0_i32 = arith.constant 0 : i32
    return %arg0, %arg1 : i32, i32
  }
  func.func @transform_7(%arg0: i32, %arg1: i32) -> (i32, i32) {
    %c0_i32 = arith.constant 0 : i32
    return %arg0, %arg1 : i32, i32
  }
}

</mosaic_0001>

<llo_original>
// kernel: tpu_custom_call.1
$region0: #{tpu_custom_call.1}
  #allocation0 [shape = 'u32[]', space=smem, size = 0x4, offset = 0x4, fixed_abs, tag = 'smem constant byte address 0x4 - core index']
  #allocation1 [shape = 'u32[144,128]{1,0:T(1,128)}', space=vmem, size = 0x12000, scoped, tag = 'internal scratch']
  %s0 = inlined_call_operand.vmem [shape: f32[32,32], index: 0, kind: input, shape index: {}]
  %s1 = inlined_call_operand.vmem [shape: f32[32,128], index: 1, kind: input, shape index: {}]
  %s2 = inlined_call_operand.vmem [shape: f32[1,128], index: 2, kind: input, shape index: {}]
  %s3 = inlined_call_operand.hbm [shape: f32[32,128], index: 3, kind: input, shape index: {}, may-alias: {3,6}]
  %s4 = inlined_call_operand.hbm [shape: f32[32,128], index: 4, kind: input, shape index: {}, may-alias: {4,7}]
  %s5 = inlined_call_operand.hbm [shape: bf16[32,128], index: 5, kind: output, shape index: {0}]
  %s6 = inlined_call_operand.hbm [shape: f32[32,128], index: 6, kind: output, shape index: {1}, may-alias: {3,6}]
  %s7 = inlined_call_operand.hbm [shape: f32[32,128], index: 7, kind: output, shape index: {2}, may-alias: {4,7}]
  %8 = xla_tuple %s5, %s6, %s7
  %s9 = sld [smem:[#allocation0]]
  $region77: #{tpu_custom_call.1} parent=0
    _
  %s11 = ssub.s32 1, %s9
  %s12 = scalar_select 0, %s11, %s9
  $region1: #{tpu_custom_call.1} parent=0
    #allocation2 [shape = 'u8[16384]{0}', space=vmem, size = 0x4000, scoped, tag = 'input window, operand 3']
    #allocation3 [shape = 's32[2]{0}', space=sflag, size = 0x8, scoped, tag = 'scoped memory for tpu_custom_call.1']
    #allocation4 [shape = 's32[2]{0}', space=sflag, size = 0x8, scoped, tag = 'scoped memory for tpu_custom_call.1']
    #allocation5 [shape = 'u8[16384]{0}', space=vmem, size = 0x4000, scoped, tag = 'input window, operand 4']
    #allocation6 [shape = 's32[2]{0}', space=sflag, size = 0x8, scoped, tag = 'scoped memory for tpu_custom_call.1']
    #allocation7 [shape = 'u8[8192]{0}', space=vmem, size = 0x2000, scoped, tag = 'output window, operand 0']
    #allocation8 [shape = 'u8[16384]{0}', space=vmem, size = 0x4000, scoped, tag = 'output window, operand 1']
    #allocation9 [shape = 's32[2]{0}', space=sflag, size = 0x8, scoped, tag = 'scoped memory for tpu_custom_call.1']
    #allocation10 [shape = 'u8[16384]{0}', space=vmem, size = 0x4000, scoped, tag = 'output window, operand 2']
    %13 = vsyncpa [#allocation3], 0
    %s14 = scalar_lea.sflag [#allocation3], 1
    %15 = vsyncpa %s14, 0
    %16 = vsyncpa [#allocation6], 0
    %s17 = scalar_lea.sflag [#allocation6], 1
    %18 = vsyncpa %s17, 0
    %19 = vsyncpa [#allocation4], 0
    %s20 = scalar_lea.sflag [#allocation4], 1
    %21 = vsyncpa %s20, 0
    %22 = vsyncpa [#allocation9], 0
    %s23 = scalar_lea.sflag [#allocation9], 1
    %24 = vsyncpa %s23, 0
    loop: start=0, step=1, limit=4
    $region2: #{tpu_custom_call.1} parent=1 // loop_pre_header
      _
    $region3: #{tpu_custom_call.1} parent=1 // loop_header
      %s26 = sphi 0, %s30
      %p27 = scmp.ge.s32.totalorder %s26, 4
      %s33 = sphi 0, %s45
      %s34 = sphi 0, %s41
      %s35 = sphi 0, %s33
      %s36 = sphi 0, %s34
      %s37 = sphi 0, %s35
      %s38 = sphi 0, %s36
      %s48 = sphi 0, %s50
      %s51 = sphi 0, %s48
      %s52 = sphi 0, %s51
      %s68 = sphi 0, %s52
      %s74 = sphi 0, %s76
      %s77 = sphi 0, %s74
      %s78 = sphi 0, %s77
      %s94 = sphi 0, %s78
      %s100 = sphi 0, %s102
      %s103 = sphi 0, %s100
      %s104 = sphi 0, %s103
      %s120 = sphi 0, %s104
      %s128 = sphi 0, %s130
      %s131 = sphi 0, %s128
      %s132 = sphi 0, %s131
      %s148 = sphi 0, %s132
      %s156 = sphi 0, %s158
      %s159 = sphi 0, %s156
      %s160 = sphi 0, %s159
      %s176 = sphi 0, %s160
      %s184 = sphi 0, %s186
      %s187 = sphi 0, %s184
      %s188 = sphi 0, %s187
      %s204 = sphi 0, %s188
      %s212 = sphi 0, %s214
      %s215 = sphi 0, %s212
      %s216 = sphi 0, %s215
      %s232 = sphi 0, %s216
      %s240 = sphi 0, %s242
      %s243 = sphi 0, %s240
      %s244 = sphi 0, %s243
      %s260 = sphi 0, %s244
    $region4: #{tpu_custom_call.1} parent=1 // loop_header_branch
      %29 = sbr.rel (%p27) target = $region8
    $region5: #{tpu_custom_call.1} parent=1 // loop_body
      %s31 = ssub.s32 %s26, 1
      %s32 = ssub.s32 %s26, 2
      %s39 = sadd.s32 1, %s34
      %p40 = scmp.ge.s32.totalorder %s39, 1
      %s41 = scalar_select %p40, 0, %s39
      %s42 = sadd.s32 1, %s33
      %s43 = scalar_select %p40, %s42, %s33
      %p44 = scmp.ge.s32.totalorder %s43, 2
      %s45 = scalar_select %p44, 0, %s43
      %s46 = ssub.s32 %s33, %s45
      %p47 = scmp.eq.s32.totalorder %s46, 0
      %s49 = sadd.s32 %s48, 1
      %s50 = scalar_select %p47, %s48, %s49
      %p53 = pneg %p47
      %p54 = scmp.eq.s32.totalorder %s26, 1
      %p55 = por %p53, %p54
      %p56 = scmp.ne.s32.totalorder %s48, %s51
      %p57 = scmp.eq.s32.totalorder %s26, 0
      %p58 = por %p56, %p57
      %p59 = scmp.ne.s32.totalorder %s48, %s51
      %p60 = scmp.eq.s32.totalorder %s31, 1
      %p61 = por %p59, %p60
      %p62 = scmp.ne.s32.totalorder %s51, %s52
      %p63 = scmp.eq.s32.totalorder %s31, 0
      %p64 = por %p62, %p63
      %p65 = scmp.ne.s32.totalorder %s51, %s52
      %p66 = scmp.eq.s32.totalorder %s32, 1
      %p67 = por %p65, %p66
      %p69 = scmp.ne.s32.totalorder %s52, %s68
      %p70 = scmp.eq.s32.totalorder %s32, 0
      %p71 = por %p69, %p70
      %s72 = ssub.s32 %s34, %s41
      %p73 = scmp.eq.s32.totalorder %s72, 0
      %s75 = sadd.s32 %s74, 1
      %s76 = scalar_select %p73, %s74, %s75
      %p79 = pneg %p73
      %p80 = scmp.eq.s32.totalorder %s26, 1
      %p81 = por %p79, %p80
      %p82 = scmp.ne.s32.totalorder %s74, %s77
      %p83 = scmp.eq.s32.totalorder %s26, 0
      %p84 = por %p82, %p83
      %p85 = scmp.ne.s32.totalorder %s74, %s77
      %p86 = scmp.eq.s32.totalorder %s31, 1
      %p87 = por %p85, %p86
      %p88 = scmp.ne.s32.totalorder %s77, %s78
      %p89 = scmp.eq.s32.totalorder %s31, 0
      %p90 = por %p88, %p89
      %p91 = scmp.ne.s32.totalorder %s77, %s78
      %p92 = scmp.eq.s32.totalorder %s32, 1
      %p93 = por %p91, %p92
      %p95 = scmp.ne.s32.totalorder %s78, %s94
      %p96 = scmp.eq.s32.totalorder %s32, 0
      %p97 = por %p95, %p96
      %s98 = ssub.s32 %s34, %s41
      %p99 = scmp.eq.s32.totalorder %s98, 0
      %s101 = sadd.s32 %s100, 1
      %s102 = scalar_select %p99, %s100, %s101
      %p105 = pneg %p99
      %p106 = scmp.eq.s32.totalorder %s26, 1
      %p107 = por %p105, %p106
      %p108 = scmp.ne.s32.totalorder %s100, %s103
      %p109 = scmp.eq.s32.totalorder %s26, 0
      %p110 = por %p108, %p109
      %p111 = scmp.ne.s32.totalorder %s100, %s103
      %p112 = scmp.eq.s32.totalorder %s31, 1
      %p113 = por %p111, %p112
      %p114 = scmp.ne.s32.totalorder %s103, %s104
      %p115 = scmp.eq.s32.totalorder %s31, 0
      %p116 = por %p114, %p115
      %p117 = scmp.ne.s32.totalorder %s103, %s104
      %p118 = scmp.eq.s32.totalorder %s32, 1
      %p119 = por %p117, %p118
      %p121 = scmp.ne.s32.totalorder %s104, %s120
      %p122 = scmp.eq.s32.totalorder %s32, 0
      %p123 = por %p121, %p122
      %s124 = ssub.s32 %s33, %s45
      %s125 = ssub.s32 %s34, %s41
      %s126 = sor.u32 %s124, %s125
      %p127 = scmp.eq.s32.totalorder %s126, 0
      %s129 = sadd.s32 %s128, 1
      %s130 = scalar_select %p127, %s128, %s129
      %p133 = pneg %p127
      %p134 = scmp.eq.s32.totalorder %s26, 1
      %p135 = por %p133, %p134
      %p136 = scmp.ne.s32.totalorder %s128, %s131
      %p137 = scmp.eq.s32.totalorder %s26, 0
      %p138 = por %p136, %p137
      %p139 = scmp.ne.s32.totalorder %s128, %s131
      %p140 = scmp.eq.s32.totalorder %s31, 1
      %p141 = por %p139, %p140
      %p142 = scmp.ne.s32.totalorder %s131, %s132
      %p143 = scmp.eq.s32.totalorder %s31, 0
      %p144 = por %p142, %p143
      %p145 = scmp.ne.s32.totalorder %s131, %s132
      %p146 = scmp.eq.s32.totalorder %s32, 1
      %p147 = por %p145, %p146
      %p149 = scmp.ne.s32.totalorder %s132, %s148
      %p150 = scmp.eq.s32.totalorder %s32, 0
      %p151 = por %p149, %p150
      %s152 = ssub.s32 %s33, %s45
      %s153 = ssub.s32 %s34, %s41
      %s154 = sor.u32 %s152, %s153
      %p155 = scmp.eq.s32.totalorder %s154, 0
      %s157 = sadd.s32 %s156, 1
      %s158 = scalar_select %p155, %s156, %s157
      %p161 = pneg %p155
      %p162 = scmp.eq.s32.totalorder %s26, 1
      %p163 = por %p161, %p162
      %p164 = scmp.ne.s32.totalorder %s156, %s159
      %p165 = scmp.eq.s32.totalorder %s26, 0
      %p166 = por %p164, %p165
      %p167 = scmp.ne.s32.totalorder %s156, %s159
      %p168 = scmp.eq.s32.totalorder %s31, 1
      %p169 = por %p167, %p168
      %p170 = scmp.ne.s32.totalorder %s159, %s160
      %p171 = scmp.eq.s32.totalorder %s31, 0
      %p172 = por %p170, %p171
      %p173 = scmp.ne.s32.totalorder %s159, %s160
      %p174 = scmp.eq.s32.totalorder %s32, 1
      %p175 = por %p173, %p174
      %p177 = scmp.ne.s32.totalorder %s160, %s176
      %p178 = scmp.eq.s32.totalorder %s32, 0
      %p179 = por %p177, %p178
      %s180 = ssub.s32 %s33, %s45
      %s181 = ssub.s32 %s34, %s41
      %s182 = sor.u32 %s180, %s181
      %p183 = scmp.eq.s32.totalorder %s182, 0
      %s185 = sadd.s32 %s184, 1
      %s186 = scalar_select %p183, %s184, %s185
      %p189 = pneg %p183
      %p190 = scmp.eq.s32.totalorder %s26, 1
      %p191 = por %p189, %p190
      %p192 = scmp.ne.s32.totalorder %s184, %s187
      %p193 = scmp.eq.s32.totalorder %s26, 0
      %p194 = por %p192, %p193
      %p195 = scmp.ne.s32.totalorder %s184, %s187
      %p196 = scmp.eq.s32.totalorder %s31, 1
      %p197 = por %p195, %p196
      %p198 = scmp.ne.s32.totalorder %s187, %s188
      %p199 = scmp.eq.s32.totalorder %s31, 0
      %p200 = por %p198, %p199
      %p201 = scmp.ne.s32.totalorder %s187, %s188
      %p202 = scmp.eq.s32.totalorder %s32, 1
      %p203 = por %p201, %p202
      %p205 = scmp.ne.s32.totalorder %s188, %s204
      %p206 = scmp.eq.s32.totalorder %s32, 0
      %p207 = por %p205, %p206
      %s208 = ssub.s32 %s33, %s45
      %s209 = ssub.s32 %s34, %s41
      %s210 = sor.u32 %s208, %s209
      %p211 = scmp.eq.s32.totalorder %s210, 0
      %s213 = sadd.s32 %s212, 1
      %s214 = scalar_select %p211, %s212, %s213
      %p217 = pneg %p211
      %p218 = scmp.eq.s32.totalorder %s26, 1
      %p219 = por %p217, %p218
      %p220 = scmp.ne.s32.totalorder %s212, %s215
      %p221 = scmp.eq.s32.totalorder %s26, 0
      %p222 = por %p220, %p221
      %p223 = scmp.ne.s32.totalorder %s212, %s215
      %p224 = scmp.eq.s32.totalorder %s31, 1
      %p225 = por %p223, %p224
      %p226 = scmp.ne.s32.totalorder %s215, %s216
      %p227 = scmp.eq.s32.totalorder %s31, 0
      %p228 = por %p226, %p227
      %p229 = scmp.ne.s32.totalorder %s215, %s216
      %p230 = scmp.eq.s32.totalorder %s32, 1
      %p231 = por %p229, %p230
      %p233 = scmp.ne.s32.totalorder %s216, %s232
      %p234 = scmp.eq.s32.totalorder %s32, 0
      %p235 = por %p233, %p234
      %s236 = ssub.s32 %s33, %s45
      %s237 = ssub.s32 %s34, %s41
      %s238 = sor.u32 %s236, %s237
      %p239 = scmp.eq.s32.totalorder %s238, 0
      %s241 = sadd.s32 %s240, 1
      %s242 = scalar_select %p239, %s240, %s241
      %p245 = pneg %p239
      %p246 = scmp.eq.s32.totalorder %s26, 1
      %p247 = por %p245, %p246
      %p248 = scmp.ne.s32.totalorder %s240, %s243
      %p249 = scmp.eq.s32.totalorder %s26, 0
      %p250 = por %p248, %p249
      %p251 = scmp.ne.s32.totalorder %s240, %s243
      %p252 = scmp.eq.s32.totalorder %s31, 1
      %p253 = por %p251, %p252
      %p254 = scmp.ne.s32.totalorder %s243, %s244
      %p255 = scmp.eq.s32.totalorder %s31, 0
      %p256 = por %p254, %p255
      %p257 = scmp.ne.s32.totalorder %s243, %s244
      %p258 = scmp.eq.s32.totalorder %s32, 1
      %p259 = por %p257, %p258
      %p261 = scmp.ne.s32.totalorder %s244, %s260
      %p262 = scmp.eq.s32.totalorder %s32, 0
      %p263 = por %p261, %p262
      %p264 = scmp.le.s32.totalorder 1, %s26
      %p265 = scmp.lt.s32.totalorder %s26, 3
      %p266 = pnand %p264, %p265
      %p267 = pneg %p266
      // Predicated region
      $region9: #{tpu_custom_call.1} parent=5 // pred_check
        _
      $region10: #{tpu_custom_call.1} parent=5 // pred_check_branch
        %269 = sbr.rel (%p266) target = $region12
      $region11: #{tpu_custom_call.1} parent=5 // pred_region
        %s270 = ssub.s32 %s26, 1
        // Predicated region
        $region13: #{tpu_custom_call.1} parent=11 // pred_check
          %p271 = pneg %p90
        $region14: #{tpu_custom_call.1} parent=11 // pred_check_branch
          %273 = sbr.rel (%p271) target = $region16
        $region15: #{tpu_custom_call.1} parent=11 // pred_region
          %p274 = scmp.lt.s32.totalorder %s36, 0
          %s275 = scalar_select %p274, %s36, 0
          %s276 = smul.addr %s275, 8
          %s277 = scalar_lea.vmem %s1, %s276
        $region16: #{tpu_custom_call.1} parent=11 // pred_fallthru
          _
        // Predicated region
        $region17: #{tpu_custom_call.1} parent=11 // pred_check
          %p278 = pneg %p116
        $region18: #{tpu_custom_call.1} parent=11 // pred_check_branch
          %280 = sbr.rel (%p278) target = $region20
        $region19: #{tpu_custom_call.1} parent=11 // pred_region
          %p281 = scmp.lt.s32.totalorder %s36, 0
          %s282 = scalar_select %p281, %s36, 0
          %s283 = scalar_lea.vmem %s2, %s282
        $region20: #{tpu_custom_call.1} parent=11 // pred_fallthru
          _
      $region12: #{tpu_custom_call.1} parent=5 // pred_fallthru
        _
      %p284 = scmp.lt.s32.totalorder %s26, 2
      // Predicated region
      $region21: #{tpu_custom_call.1} parent=5 // pred_check
        %p285 = pneg %p284
      $region22: #{tpu_custom_call.1} parent=5 // pred_check_branch
        %287 = sbr.rel (%p285) target = $region24
      $region23: #{tpu_custom_call.1} parent=5 // pred_region
        // Predicated region
        $region25: #{tpu_custom_call.1} parent=23 // pred_check
          %p288 = pneg %p58
        $region26: #{tpu_custom_call.1} parent=23 // pred_check_branch
          %290 = sbr.rel (%p288) target = $region28
        $region27: #{tpu_custom_call.1} parent=23 // pred_region
          %s291 = smul.u32 2, %s33
          %p292 = scmp.lt.s32.totalorder %s291, 3
          %s293 = scalar_select %p292, %s291, 3
          %s294 = smul.addr %s293, 8
          %s295 = scalar_lea.vmem %s0, %s294
          %s296 = smul.u32 2, %s33
        $region28: #{tpu_custom_call.1} parent=23 // pred_fallthru
          _
        // Predicated region
        $region29: #{tpu_custom_call.1} parent=23 // pred_check
          %p297 = pneg %p138
        $region30: #{tpu_custom_call.1} parent=23 // pred_check_branch
          %299 = sbr.rel (%p297) target = $region32
        $region31: #{tpu_custom_call.1} parent=23 // pred_region
          %s300 = sand.u32 %s128, 1
          %s301 = scalar_lea.sflag [#allocation3], %s300
          %s302 = sand.u32 %s128, 1
          %s303 = smul.addr %s302, 16
          %s304 = scalar_lea.vmem [#allocation2], %s303
          %s305 = smul.u32 2, %s33
          %s307 = ssub.s32 256, 256
          %308 = vsyncadd %s301, %s307
          %s309 = sadd.s32 %s34, %s305
          %s310 = smul.addr %s309, 128
          %s311 = scalar_lea.hbm %s3, %s310
          %s312 = sshll.u32 %s304, 4
          %s313 = int_to_ptr.vmem [resolvable:$true] %s312
          %318 = dma.hbm_to_vmem [thread:$0]  %s311, 256, %s313, %s301, 128, 128, 8
        $region32: #{tpu_custom_call.1} parent=23 // pred_fallthru
          _
        // Predicated region
        $region33: #{tpu_custom_call.1} parent=23 // pred_check
          %p319 = pneg %p166
        $region34: #{tpu_custom_call.1} parent=23 // pred_check_branch
          %321 = sbr.rel (%p319) target = $region36
        $region35: #{tpu_custom_call.1} parent=23 // pred_region
          %s322 = sand.u32 %s156, 1
          %s323 = scalar_lea.sflag [#allocation6], %s322
          %s324 = sand.u32 %s156, 1
          %s325 = smul.addr %s324, 16
          %s326 = scalar_lea.vmem [#allocation5], %s325
          %s327 = smul.u32 2, %s33
          %s329 = ssub.s32 256, 256
          %330 = vsyncadd %s323, %s329
          %s331 = sadd.s32 %s34, %s327
          %s332 = smul.addr %s331, 128
          %s333 = scalar_lea.hbm %s4, %s332
          %s334 = sshll.u32 %s326, 4
          %s335 = int_to_ptr.vmem [resolvable:$true] %s334
          %340 = dma.hbm_to_vmem [thread:$0]  %s333, 256, %s335, %s323, 128, 128, 8
        $region36: #{tpu_custom_call.1} parent=23 // pred_fallthru
          _
      $region24: #{tpu_custom_call.1} parent=5 // pred_fallthru
        _
      %p341 = scmp.le.s32.totalorder 1, %s26
      %p342 = scmp.lt.s32.totalorder %s26, 3
      %p343 = pnand %p341, %p342
      %p344 = pneg %p343
      // Predicated region
      $region37: #{tpu_custom_call.1} parent=5 // pred_check
        _
      $region38: #{tpu_custom_call.1} parent=5 // pred_check_branch
        %346 = sbr.rel (%p343) target = $region40
      $region39: #{tpu_custom_call.1} parent=5 // pred_region
        %s347 = ssub.s32 %s26, 1
        %s348 = sand.u32 %s131, 1
        %s349 = scalar_lea.sflag [#allocation3], %s348
        %s350 = sand.u32 %s131, 1
        %s351 = smul.addr %s350, 16
        %s352 = scalar_lea.vmem [#allocation2], %s351
        // Predicated region
        $region41: #{tpu_custom_call.1} parent=39 // pred_check
          %p353 = pneg %p144
        $region42: #{tpu_custom_call.1} parent=39 // pred_check_branch
          %355 = sbr.rel (%p353) target = $region44
        $region43: #{tpu_custom_call.1} parent=39 // pred_region
          %356 = dma.done %s349, 256
        $region44: #{tpu_custom_call.1} parent=39 // pred_fallthru
          _
        %s357 = sand.u32 %s159, 1
        %s358 = scalar_lea.sflag [#allocation6], %s357
        %s359 = sand.u32 %s159, 1
        %s360 = smul.addr %s359, 16
        %s361 = scalar_lea.vmem [#allocation5], %s360
        // Predicated region
        $region45: #{tpu_custom_call.1} parent=39 // pred_check
          %p362 = pneg %p172
        $region46: #{tpu_custom_call.1} parent=39 // pred_check_branch
          %364 = sbr.rel (%p362) target = $region48
        $region47: #{tpu_custom_call.1} parent=39 // pred_region
          %365 = dma.done %s358, 256
        $region48: #{tpu_custom_call.1} parent=39 // pred_fallthru
          _
        %s366 = smul.u32 2, %s35
        %p367 = scmp.lt.s32.totalorder %s366, 3
        %s368 = scalar_select %p367, %s366, 3
        %s369 = smul.addr %s368, 8
        %s370 = scalar_lea.vmem %s0, %s369
        %p371 = pneg %p64
        %p372 = pneg %p61
        %p373 = scmp.lt.s32.totalorder %s36, 0
        %s374 = scalar_select %p373, %s36, 0
        %s375 = smul.addr %s374, 8
        %s376 = scalar_lea.vmem %s1, %s375
        %p377 = pneg %p90
        %p378 = pneg %p87
        %p379 = scmp.lt.s32.totalorder %s36, 0
        %s380 = scalar_select %p379, %s36, 0
        %s381 = scalar_lea.vmem %s2, %s380
        %p382 = pneg %p116
        %p383 = pneg %p113
        %s384 = sand.u32 %s131, 1
        %s385 = scalar_lea.sflag [#allocation3], %s384
        %s386 = sand.u32 %s131, 1
        %s387 = smul.addr %s386, 16
        %s388 = scalar_lea.vmem [#allocation2], %s387
        %p389 = pneg %p144
        %p390 = pneg %p141
        %s391 = sand.u32 %s159, 1
        %s392 = scalar_lea.sflag [#allocation6], %s391
        %s393 = sand.u32 %s159, 1
        %s394 = smul.addr %s393, 16
        %s395 = scalar_lea.vmem [#allocation5], %s394
        %p396 = pneg %p172
        %p397 = pneg %p169
        %p398 = pneg %p200
        %p399 = pneg %p197
        %s400 = sand.u32 %s187, 1
        %s401 = scalar_lea.sflag [#allocation4], %s400
        %s402 = sand.u32 %s187, 1
        %s403 = smul.addr %s402, 8
        %s404 = scalar_lea.vmem [#allocation7], %s403
        %p405 = pneg %p228
        %p406 = pneg %p225
        %s407 = sand.u32 %s31, 1
        %s408 = scalar_lea.sflag [#allocation9], %s407
        %s409 = sand.u32 %s215, 1
        %s410 = smul.addr %s409, 16
        %s411 = scalar_lea.vmem [#allocation8], %s410
        %p412 = pneg %p256
        %p413 = pneg %p253
        %s414 = sand.u32 %s31, 1
        %s415 = scalar_lea.sflag [#allocation9], %s414
        %s416 = sand.u32 %s243, 1
        %s417 = smul.addr %s416, 16
        %s418 = scalar_lea.vmem [#allocation10], %s417
        %s419 = smul.u32 2, %s35
        %p420 = scmp.lt.s32.totalorder %s419, 3
        %s421 = scalar_select %p420, %s419, 3
        %s422 = smul.addr %s421, 8
        %s423 = scalar_lea.vmem %s0, %s422
        %s424 = smul.u32 2, %s35
        %p425 = scmp.lt.s32.totalorder %s36, 0
        %s426 = scalar_select %p425, %s36, 0
        %s427 = smul.addr %s426, 8
        %s428 = scalar_lea.vmem %s1, %s427
        %p429 = scmp.lt.s32.totalorder %s36, 0
        %s430 = scalar_select %p429, %s36, 0
        %s431 = scalar_lea.vmem %s2, %s430
        %s432 = smul.u32 2, %s35
        %s433 = smul.u32 2, %s35
        %s434 = smul.u32 2, %s35
        %s435 = smul.u32 2, %s35
        %s436 = smul.u32 2, %s35
        %v437 = vld [vmem:[%s423] sm:$0xff]
        %v438 = vld [vmem:[%s423 + $0x8] sm:$0xff]
        %v439 = vld [vmem:[%s428] sm:$0xff]
        %v440 = vld [vmem:[%s428 + $0x8] sm:$0xff]
        %v441 = vld [vmem:[%s428 + $0x10] sm:$0xff]
        %v442 = vld [vmem:[%s428 + $0x18] sm:$0xff]
        %v443 = vld [vmem:[%s431] sm:$0x1]
        %v445 = vlaneseq
        %v446 = vshrl.u32 %v445, 7
        %v447 = vsub.s32 0, %v446
        %v448 = vrot.slane %v443, %v447
        %vm450 = vcmask 261120
        %v452 = vsel %vm450, %v437, 0
        %v455 = vsel %vm450, %v438, 0
        %457 = vmatprep.subr.mxu0 0.0
        %458 = vmatpush1.msra.mxu0 %v439
        %459 = vmatprep.subr.mxu0 0.0
        %460 = vmatpush1.msra.mxu0 %v440
        %461 = vmatprep.subr.mxu0 0.0
        %462 = vmatpush1.msra.mxu0 %v441
        %463 = vmatprep.subr.mxu0 0.0
        %464 = vmatpush1.msra.mxu0 %v442
        %465 = vmatprep.subr.mxu0 0.0
        %466 = vmatpush1.msra.mxu0 0.0
        %467 = vmatprep.subr.mxu0 0.0
        %468 = vmatpush1.msra.mxu0 0.0
        %469 = vmatprep.subr.mxu0 0.0
        %470 = vmatpush1.msra.mxu0 0.0
        %471 = vmatprep.subr.mxu0 0.0
        %472 = vmatpush1.msra.mxu0 0.0
        %473 = vmatprep.subr.mxu0 0.0
        %474 = vmatpush1.msra.mxu0 0.0
        %475 = vmatprep.subr.mxu0 0.0
        %476 = vmatpush1.msra.mxu0 0.0
        %477 = vmatprep.subr.mxu0 0.0
        %478 = vmatpush1.msra.mxu0 0.0
        %479 = vmatprep.subr.mxu0 0.0
        %480 = vmatpush1.msra.mxu0 0.0
        %481 = vmatprep.subr.mxu0 0.0
        %482 = vmatpush1.msra.mxu0 0.0
        %483 = vmatprep.subr.mxu0 0.0
        %484 = vmatpush1.msra.mxu0 0.0
        %485 = vmatprep.subr.mxu0 0.0
        %486 = vmatpush1.msra.mxu0 0.0
        %487 = vmatprep.subr.mxu0 0.0
        %488 = vmatpush1.msra.mxu0 0.0
        %489 = vmatprep.subr.mxu0 0.0
        %490 = vmatpush1.msra.mxu0 0.0
        %491 = vmatprep.subr.mxu0 0.0
        %492 = vmatpush1.msra.mxu0 0.0
        %493 = vmatprep.subr.mxu0 0.0
        %494 = vmatpush1.msra.mxu0 0.0
        %495 = vmatprep.subr.mxu0 0.0
        %496 = vmatpush1.msra.mxu0 0.0
        %497 = vmatprep.subr.mxu0 0.0
        %498 = vmatpush1.msra.mxu0 0.0
        %499 = vmatprep.subr.mxu0 0.0
        %500 = vmatpush1.msra.mxu0 0.0
        %501 = vmatprep.subr.mxu0 0.0
        %502 = vmatpush1.msra.mxu0 0.0
        %503 = vmatprep.subr.mxu0 0.0
        %504 = vmatpush1.msra.mxu0 0.0
        %505 = vmatprep.subr.mxu0 0.0
        %506 = vmatpush1.msra.mxu0 0.0
        %507 = vmatprep.subr.mxu0 0.0
        %508 = vmatpush1.msra.mxu0 0.0
        %509 = vmatprep.subr.mxu0 0.0
        %510 = vmatpush1.msra.mxu0 0.0
        %511 = vmatprep.subr.mxu0 0.0
        %512 = vmatpush1.msra.mxu0 0.0
        %513 = vmatprep.subr.mxu0 0.0
        %514 = vmatpush1.msra.mxu0 0.0
        %515 = vmatprep.subr.mxu0 0.0
        %516 = vmatpush1.msra.mxu0 0.0
        %517 = vmatprep.subr.mxu0 0.0
        %518 = vmatpush1.msra.mxu0 0.0
        %519 = vmatprep.subr.mxu0 0.0
        %520 = vmatpush1.msra.mxu0 0.0
        %521 = vmatprep.mubr.f32.mxu0 0.0
        %522 = vmatmul.mubr.f32.gmra.mrb[0].mxu0 %v452
        %v523 = vpop.f32.mrb[0].mxu0
        %v524 = vadd.f32 %v448, %v523
        %v525 = vpop.f32.mrb[0].mxu0
        %526 = vmatprep.mubr.f32.mxu0 0.0
        %527 = vmatmul.mubr.f32.gmra.mrb[0].mxu0 %v455
        %v528 = vpop.f32.mrb[0].mxu0
        %v529 = vadd.f32 %v448, %v528
        %v530 = vpop.f32.mrb[0].mxu0
        %531 = vdwg.mxu0
        %v532 = vld [vmem:[%s352] sm:$0xff]
        %v533 = vld [vmem:[%s352 + $0x8] sm:$0xff]
        %v534 = vld [vmem:[%s361] sm:$0xff]
        %v535 = vld [vmem:[%s361 + $0x8] sm:$0xff]
        %v536 = vmul.f32 %v534, 0.8187308
        %v537 = vmul.f32 %v535, 0.8187308
        %v538 = vadd.f32 %v536, %v524
        %v539 = vadd.f32 %v537, %v529
        %v540 = vmul.f32 %v532, 0.95122945
        %v541 = vmul.f32 %v533, 0.95122945
        %v542 = vadd.f32 %v540, %v538
        %v543 = vadd.f32 %v541, %v539
        %vm544 = vcmp.ge.f32.partialorder %v542, 1.0
        %vm545 = vcmp.ge.f32.partialorder %v543, 1.0
        %v546 = vsel %vm544, 0.0, %v542
        %v547 = vsel %vm545, 0.0, %v543
        %v548 = vsel %vm544, 1, 0
        %v549 = vsel %vm545, 1, 0
        %v550 = vcvt.s32.f32 %v548
        %v551 = vcvt.s32.f32 %v549
        %v552 = vpack.c.bf16 %v551, %v550
        %v554 = vunpack.c.l.b16 %v552
        %v555 = vunpack.c.h.b16 %v552
        %v556 = vpack.c.b16 %v554, %v554
        %v557 = vpack.c.b16 %v555, %v555
        %560 = vst [vmem:[%s404] sm:$0xf] %v556
        %561 = vst [vmem:[%s404 + $0x4] sm:$0xf] %v557
        %562 = vst [vmem:[%s411] sm:$0xff] %v546
        %563 = vst [vmem:[%s411 + $0x8] sm:$0xff] %v547
        %564 = vst [vmem:[%s418] sm:$0xff] %v538
        %565 = vst [vmem:[%s418 + $0x8] sm:$0xff] %v539
        %s566 = sand.u32 %s187, 1
        %s567 = scalar_lea.sflag [#allocation4], %s566
        %s568 = sand.u32 %s187, 1
        %s569 = smul.addr %s568, 8
        %s570 = scalar_lea.vmem [#allocation7], %s569
        %s571 = sand.u32 %s31, 1
        %s572 = scalar_lea.sflag [#allocation9], %s571
        %s573 = sand.u32 %s215, 1
        %s574 = smul.addr %s573, 16
        %s575 = scalar_lea.vmem [#allocation8], %s574
        %s576 = sand.u32 %s31, 1
        %s577 = scalar_lea.sflag [#allocation9], %s576
        %s578 = sand.u32 %s243, 1
        %s579 = smul.addr %s578, 16
        %s580 = scalar_lea.vmem [#allocation10], %s579
        // Predicated region
        $region49: #{tpu_custom_call.1} parent=39 // pred_check
          %p581 = pneg %p197
        $region50: #{tpu_custom_call.1} parent=39 // pred_check_branch
          %583 = sbr.rel (%p581) target = $region52
        $region51: #{tpu_custom_call.1} parent=39 // pred_region
          %s584 = smul.u32 2, %s35
          %s586 = ssub.s32 128, 128
          %587 = vsyncadd %s567, %s586
          %s588 = sadd.s32 %s36, %s584
          %s589 = smul.addr %s588, 64
          %s590 = scalar_lea.hbm %s5, %s589
          %s591 = sshll.u32 %s570, 4
          %s592 = int_to_ptr.vmem [resolvable:$true] %s591
          %597 = dma.vmem_to_hbm [thread:$0]  %s592, 128, %s590, %s567, 64, 64, 4
        $region52: #{tpu_custom_call.1} parent=39 // pred_fallthru
          _
        // Predicated region
        $region53: #{tpu_custom_call.1} parent=39 // pred_check
          %p598 = pneg %p225
        $region54: #{tpu_custom_call.1} parent=39 // pred_check_branch
          %600 = sbr.rel (%p598) target = $region56
        $region55: #{tpu_custom_call.1} parent=39 // pred_region
          %s601 = smul.u32 2, %s35
          %s603 = ssub.s32 256, 256
          %604 = vsyncadd %s572, %s603
          %s605 = sadd.s32 %s36, %s601
          %s606 = smul.addr %s605, 128
          %s607 = scalar_lea.hbm %s6, %s606
          %s608 = sshll.u32 %s575, 4
          %s609 = int_to_ptr.vmem [resolvable:$true] %s608
          %614 = dma.vmem_to_hbm [thread:$0]  %s609, 256, %s607, %s572, 128, 128, 8
        $region56: #{tpu_custom_call.1} parent=39 // pred_fallthru
          _
        // Predicated region
        $region57: #{tpu_custom_call.1} parent=39 // pred_check
          %p615 = pneg %p253
        $region58: #{tpu_custom_call.1} parent=39 // pred_check_branch
          %617 = sbr.rel (%p615) target = $region60
        $region59: #{tpu_custom_call.1} parent=39 // pred_region
          %s618 = smul.u32 2, %s35
          %s620 = ssub.s32 256, 256
          %621 = vsyncadd %s577, %s620
          %s622 = sadd.s32 %s36, %s618
          %s623 = smul.addr %s622, 128
          %s624 = scalar_lea.hbm %s7, %s623
          %s625 = sshll.u32 %s580, 4
          %s626 = int_to_ptr.vmem [resolvable:$true] %s625
          %631 = dma.vmem_to_hbm [thread:$0]  %s626, 256, %s624, %s577, 128, 128, 8
        $region60: #{tpu_custom_call.1} parent=39 // pred_fallthru
          _
      $region40: #{tpu_custom_call.1} parent=5 // pred_fallthru
        _
      %p632 = scmp.le.s32.totalorder 2, %s26
      // Predicated region
      $region61: #{tpu_custom_call.1} parent=5 // pred_check
        %p633 = pneg %p632
      $region62: #{tpu_custom_call.1} parent=5 // pred_check_branch
        %635 = sbr.rel (%p633) target = $region64
      $region63: #{tpu_custom_call.1} parent=5 // pred_region
        %s636 = ssub.s32 %s26, 2
        // Predicated region
        $region65: #{tpu_custom_call.1} parent=63 // pred_check
          %p637 = pneg %p203
        $region66: #{tpu_custom_call.1} parent=63 // pred_check_branch
          %639 = sbr.rel (%p637) target = $region68
        $region67: #{tpu_custom_call.1} parent=63 // pred_region
          %s640 = sand.u32 %s188, 1
          %s641 = scalar_lea.sflag [#allocation4], %s640
          %s642 = sand.u32 %s188, 1
          %s643 = smul.addr %s642, 8
          %s644 = scalar_lea.vmem [#allocation7], %s643
          %645 = dma.done %s641, 128
        $region68: #{tpu_custom_call.1} parent=63 // pred_fallthru
          _
        // Predicated region
        $region69: #{tpu_custom_call.1} parent=63 // pred_check
          %p646 = pneg %p231
        $region70: #{tpu_custom_call.1} parent=63 // pred_check_branch
          %648 = sbr.rel (%p646) target = $region72
        $region71: #{tpu_custom_call.1} parent=63 // pred_region
          %s649 = sand.u32 %s32, 1
          %s650 = scalar_lea.sflag [#allocation9], %s649
          %s651 = sand.u32 %s216, 1
          %s652 = smul.addr %s651, 16
          %s653 = scalar_lea.vmem [#allocation8], %s652
          %654 = dma.done %s650, 256
        $region72: #{tpu_custom_call.1} parent=63 // pred_fallthru
          _
        // Predicated region
        $region73: #{tpu_custom_call.1} parent=63 // pred_check
          %p655 = pneg %p259
        $region74: #{tpu_custom_call.1} parent=63 // pred_check_branch
          %657 = sbr.rel (%p655) target = $region76
        $region75: #{tpu_custom_call.1} parent=63 // pred_region
          %s658 = sand.u32 %s32, 1
          %s659 = scalar_lea.sflag [#allocation9], %s658
          %s660 = sand.u32 %s244, 1
          %s661 = smul.addr %s660, 16
          %s662 = scalar_lea.vmem [#allocation10], %s661
          %663 = dma.done %s659, 256
        $region76: #{tpu_custom_call.1} parent=63 // pred_fallthru
          _
      $region64: #{tpu_custom_call.1} parent=5 // pred_fallthru
        _
    $region6: #{tpu_custom_call.1} parent=1 // loop_footer
      %s30 = sadd.s32 1, %s26
    $region7: #{tpu_custom_call.1} parent=1 // loop_footer_branch
      %25 = sbr.rel target = $region3
    $region8: #{tpu_custom_call.1} parent=1 // loop_exit
      _
    %664 = vsyncpa [#allocation3], 1
    %s665 = scalar_lea.sflag [#allocation3], 1
    %666 = vsyncpa %s665, 1
    %667 = vsyncpa [#allocation6], 1
    %s668 = scalar_lea.sflag [#allocation6], 1
    %669 = vsyncpa %s668, 1
    %670 = vsyncpa [#allocation4], 1
    %s671 = scalar_lea.sflag [#allocation4], 1
    %672 = vsyncpa %s671, 1
    %673 = vsyncpa [#allocation9], 1
    %s674 = scalar_lea.sflag [#allocation9], 1
    %675 = vsyncpa %s674, 1

</llo_original>
